<compile_context>
chip_gen: v5e
topology: v5e:2x2
jax: 0.10.0
libtpu: 0.0.40
codegen_flags: <defaults>
</compile_context>

<pallas_src>
import functools

import jax
import jax.numpy as jnp
from jax.experimental import pallas as pl
from jax.experimental.pallas import tpu as pltpu


def bayesian_net_kernel(x_ref,
                        w1mu_ref, w1sig_ref, eps_w1_ref,
                        b1mu_ref, b1sig_ref, eps_b1_ref,
                        mask_ref,
                        w2mu_ref, w2sig_ref, eps_w2_ref,
                        b2mu_ref, b2sig_ref, eps_b2_ref,
                        out_ref):
    x = x_ref[...]                                                   # (Bp, Dinp)

    # ---- layer 1: reparameterized weights/bias (weights stored (Din, H)) ----
    w1 = w1mu_ref[...] + w1sig_ref[...] * eps_w1_ref[...]            # (Dinp, Hp)
    b1 = b1mu_ref[...] + b1sig_ref[...] * eps_b1_ref[...]            # (1, Hp)

    h = jnp.dot(x, w1, preferred_element_type=jnp.float32) + b1      # (Bp, Hp)
    h = jnp.maximum(h, 0.0)                                          # ReLU

    # ---- dropout: mask is pre-scaled (0 or 1/keep_prob); one VPU multiply ---
    h = h * mask_ref[...]

    # ---- layer 2: reparameterized weights/bias (weights stored (H, Dout)) ---
    w2 = w2mu_ref[...] + w2sig_ref[...] * eps_w2_ref[...]            # (Hp, Doutp)
    b2 = b2mu_ref[...] + b2sig_ref[...] * eps_b2_ref[...]            # (1, Doutp)

    out_ref[...] = jnp.dot(h, w2, preferred_element_type=jnp.float32) + b2


def _round_up(n: int, m: int) -> int:
    return ((n + m - 1) // m) * m


def bayesian_network_forward(x, params, key, *, dropout_rate: float = 0.1):
    """params = (w1mu, w1sig, b1mu, b1sig, w2mu, w2sig, b2mu, b2sig) in
    PyTorch layout: weights (out, in), biases (out,).  Reparameterization
    noise and the dropout mask are drawn from `key` in the wrapper and the
    reparameterization itself happens inside the kernel."""
    w1mu, w1sig, b1mu, b1sig, w2mu, w2sig, b2mu, b2sig = params
    batch, d_in = x.shape
    hidden = w1mu.shape[0]
    d_out = w2mu.shape[0]

    # Lane/sublane-aligned (padded) shapes: last dim multiple of 128,
    # batch multiple of 8.  Padded regions are zero so they never contribute
    # to the valid output slice.
    bp = _round_up(batch, 8)
    dinp = _round_up(d_in, 128)
    hidp = _round_up(hidden, 128)
    doutp = _round_up(d_out, 128)

    f32 = jnp.float32

    def pad2(a, rows, cols):
        return jnp.pad(a.astype(f32),
                       ((0, rows - a.shape[0]), (0, cols - a.shape[1])))

    def pad_bias(b, cols):
        b = b.astype(f32).reshape(1, -1)
        return jnp.pad(b, ((0, 0), (0, cols - b.shape[1])))

    xp = pad2(x, bp, dinp)
    # Pre-transpose weights to (in_features, out_features): no .T in-kernel.
    w1mu_t, w1sig_t = pad2(w1mu.T, dinp, hidp), pad2(w1sig.T, dinp, hidp)
    w2mu_t, w2sig_t = pad2(w2mu.T, hidp, doutp), pad2(w2sig.T, hidp, doutp)
    b1mu_p, b1sig_p = pad_bias(b1mu, hidp), pad_bias(b1sig, hidp)
    b2mu_p, b2sig_p = pad_bias(b2mu, doutp), pad_bias(b2sig, doutp)

    # --- randomness (drawn at the padded sizes; padded sigma is zero so the
    # padded noise never contributes) ---------------------------------------
    k_w1, k_b1, k_w2, k_b2, k_drop = jax.random.split(key, 5)
    eps_w1 = jax.random.normal(k_w1, (dinp, hidp), f32)
    eps_b1 = jax.random.normal(k_b1, (1, hidp), f32)
    eps_w2 = jax.random.normal(k_w2, (hidp, doutp), f32)
    eps_b2 = jax.random.normal(k_b2, (1, doutp), f32)

    keep_prob = 1.0 - float(dropout_rate)
    if float(dropout_rate) > 0.0:
        keep = jax.random.bernoulli(k_drop, keep_prob, (bp, hidp))
        mask = keep.astype(f32) * (1.0 / keep_prob)      # 0 or 1/keep_prob
    else:
        mask = jnp.ones((bp, hidp), f32)

    flops = (2 * bp * (dinp * hidp + hidp * doutp)        # matmuls
             + 2 * (dinp * hidp + hidp * doutp)           # weight reparam
             + 2 * bp * hidp)                             # relu + dropout mul
    bytes_accessed = 4 * (xp.size
                          + 3 * (dinp * hidp + hidp * doutp)   # mu + sigma + eps
                          + 3 * (hidp + doutp)                 # bias mu/sigma/eps
                          + bp * hidp                          # dropout mask
                          + bp * doutp)                        # output

    vmem = pl.BlockSpec(memory_space=pltpu.MemorySpace.VMEM)

    out_p = pl.pallas_call(
        bayesian_net_kernel,
        out_shape=jax.ShapeDtypeStruct((bp, doutp), jnp.float32),
        in_specs=[vmem] * 14,
        out_specs=vmem,
        cost_estimate=pl.CostEstimate(flops=int(flops),
                                      transcendentals=0,
                                      bytes_accessed=int(bytes_accessed)),
    )(xp,
      w1mu_t, w1sig_t, eps_w1, b1mu_p, b1sig_p, eps_b1,
      mask,
      w2mu_t, w2sig_t, eps_w2, b2mu_p, b2sig_p, eps_b2)

    return out_p[:batch, :d_out]


if __name__ == "__main__":
    # Small shapes consistent with the module: x is (batch, input_dim).
    batch, input_dim, hidden_dim, output_dim = 8, 32, 64, 16
    dropout_rate = 0.1

    key = jax.random.PRNGKey(0)
    keys = jax.random.split(key, 10)

    x = jax.random.normal(keys[0], (batch, input_dim), jnp.float32)

    # Parameters as in the module __init__: randn * 0.1 (PyTorch layout).
    w1mu = 0.1 * jax.random.normal(keys[1], (hidden_dim, input_dim), jnp.float32)
    w1sig = 0.1 * jax.random.normal(keys[2], (hidden_dim, input_dim), jnp.float32)
    b1mu = 0.1 * jax.random.normal(keys[3], (hidden_dim,), jnp.float32)
    b1sig = 0.1 * jax.random.normal(keys[4], (hidden_dim,), jnp.float32)
    w2mu = 0.1 * jax.random.normal(keys[5], (output_dim, hidden_dim), jnp.float32)
    w2sig = 0.1 * jax.random.normal(keys[6], (output_dim, hidden_dim), jnp.float32)
    b2mu = 0.1 * jax.random.normal(keys[7], (output_dim,), jnp.float32)
    b2sig = 0.1 * jax.random.normal(keys[8], (output_dim,), jnp.float32)
    params = (w1mu, w1sig, b1mu, b1sig, w2mu, w2sig, b2mu, b2sig)

    # 1) Stochastic forward pass (full module semantics: sampled weights,
    #    sampled biases, train-mode dropout).
    out = bayesian_network_forward(x, params, keys[9], dropout_rate=dropout_rate)
    out = jax.block_until_ready(out)
    assert out.shape == (batch, output_dim)
    assert bool(jnp.all(jnp.isfinite(out)))

    # 2) Deterministic check of the data path: with sigma == 0 and dropout off,
    #    the sampled noise cancels and the kernel must match plain JAX.
    det_params = (w1mu, jnp.zeros_like(w1sig), b1mu, jnp.zeros_like(b1sig),
                  w2mu, jnp.zeros_like(w2sig), b2mu, jnp.zeros_like(b2sig))
    out_det = bayesian_network_forward(x, det_params, keys[9], dropout_rate=0.0)
    out_det = jax.block_until_ready(out_det)
    ref = jnp.maximum(x @ w1mu.T + b1mu, 0.0) @ w2mu.T + b2mu
    assert jnp.allclose(out_det, ref, atol=1e-4, rtol=1e-4), float(
        jnp.max(jnp.abs(out_det - ref)))

    # 3) Full-semantics cross-check: feed the same eps/mask through a pure-JAX
    #    reference by reusing the same key split as the wrapper.
    k_w1, k_b1, k_w2, k_b2, k_drop = jax.random.split(keys[9], 5)
    dinp, hidp, doutp = 128, 128, 128
    ew1 = jax.random.normal(k_w1, (dinp, hidp))[:input_dim, :hidden_dim]
    eb1 = jax.random.normal(k_b1, (1, hidp))[0, :hidden_dim]
    ew2 = jax.random.normal(k_w2, (hidp, doutp))[:hidden_dim, :output_dim]
    eb2 = jax.random.normal(k_b2, (1, doutp))[0, :output_dim]
    keep_prob = 1.0 - dropout_rate
    m = jax.random.bernoulli(k_drop, keep_prob, (8, hidp)).astype(jnp.float32)
    m = m[:batch, :hidden_dim] / keep_prob
    w1s = w1mu.T + w1sig.T * ew1
    w2s = w2mu.T + w2sig.T * ew2
    href = jnp.maximum(x @ w1s + (b1mu + b1sig * eb1), 0.0) * m
    oref = href @ w2s + (b2mu + b2sig * eb2)
    assert jnp.allclose(out, oref, atol=1e-4, rtol=1e-4), float(
        jnp.max(jnp.abs(out - oref)))

    print("KERNEL_OK")
</pallas_src>

<mosaic_0001>
module attributes {stable_mosaic.version = 11 : i64} {
  func.func @bayesian_net_kernel(%arg0: memref<8x128xf32, #tpu.memory_space<vmem>>, %arg1: memref<128x128xf32, #tpu.memory_space<vmem>>, %arg2: memref<128x128xf32, #tpu.memory_space<vmem>>, %arg3: memref<128x128xf32, #tpu.memory_space<vmem>>, %arg4: memref<1x128xf32, #tpu.memory_space<vmem>>, %arg5: memref<1x128xf32, #tpu.memory_space<vmem>>, %arg6: memref<1x128xf32, #tpu.memory_space<vmem>>, %arg7: memref<8x128xf32, #tpu.memory_space<vmem>>, %arg8: memref<128x128xf32, #tpu.memory_space<vmem>>, %arg9: memref<128x128xf32, #tpu.memory_space<vmem>>, %arg10: memref<128x128xf32, #tpu.memory_space<vmem>>, %arg11: memref<1x128xf32, #tpu.memory_space<vmem>>, %arg12: memref<1x128xf32, #tpu.memory_space<vmem>>, %arg13: memref<1x128xf32, #tpu.memory_space<vmem>>, %arg14: memref<8x128xf32, #tpu.memory_space<vmem>>) attributes {dimension_semantics = [], scalar_prefetch = 0 : i64, scratch_operands = 0 : i64, tpu.core_type = #tpu.core_type<tc>} {
    %c0 = arith.constant 0 : index
    %c0_0 = arith.constant 0 : index
    %0 = vector.load %arg0[%c0, %c0_0] : memref<8x128xf32, #tpu.memory_space<vmem>>, vector<8x128xf32>
    %c0_1 = arith.constant 0 : index
    %c0_2 = arith.constant 0 : index
    %1 = vector.load %arg1[%c0_1, %c0_2] : memref<128x128xf32, #tpu.memory_space<vmem>>, vector<128x128xf32>
    %c0_3 = arith.constant 0 : index
    %c0_4 = arith.constant 0 : index
    %2 = vector.load %arg2[%c0_3, %c0_4] : memref<128x128xf32, #tpu.memory_space<vmem>>, vector<128x128xf32>
    %c0_5 = arith.constant 0 : index
    %c0_6 = arith.constant 0 : index
    %3 = vector.load %arg3[%c0_5, %c0_6] : memref<128x128xf32, #tpu.memory_space<vmem>>, vector<128x128xf32>
    %4 = arith.mulf %2, %3 : vector<128x128xf32>
    %5 = arith.addf %1, %4 : vector<128x128xf32>
    %c0_7 = arith.constant 0 : index
    %c0_8 = arith.constant 0 : index
    %6 = vector.load %arg4[%c0_7, %c0_8] : memref<1x128xf32, #tpu.memory_space<vmem>>, vector<1x128xf32>
    %c0_9 = arith.constant 0 : index
    %c0_10 = arith.constant 0 : index
    %7 = vector.load %arg5[%c0_9, %c0_10] : memref<1x128xf32, #tpu.memory_space<vmem>>, vector<1x128xf32>
    %c0_11 = arith.constant 0 : index
    %c0_12 = arith.constant 0 : index
    %8 = vector.load %arg6[%c0_11, %c0_12] : memref<1x128xf32, #tpu.memory_space<vmem>>, vector<1x128xf32>
    %9 = arith.mulf %7, %8 : vector<1x128xf32>
    %10 = arith.addf %6, %9 : vector<1x128xf32>
    %cst = arith.constant dense<0.000000e+00> : vector<8x128xf32>
    %11 = tpu.matmul %0, %5, %cst {dimension_numbers = #tpu.dot_dimension_numbers<[1], [0], [0], [1], [0, 0, 1, 1], [], []>} : vector<8x128xf32>, vector<128x128xf32>, vector<8x128xf32> -> vector<8x128xf32>
    %12 = vector.broadcast %10 : vector<1x128xf32> to vector<8x128xf32>
    %13 = arith.addf %11, %12 : vector<8x128xf32>
    %cst_13 = arith.constant 0.000000e+00 : f32
    %14 = vector.broadcast %cst_13 : f32 to vector<8x128xf32>
    %15 = arith.maximumf %13, %14 : vector<8x128xf32>
    %c0_14 = arith.constant 0 : index
    %c0_15 = arith.constant 0 : index
    %16 = vector.load %arg7[%c0_14, %c0_15] : memref<8x128xf32, #tpu.memory_space<vmem>>, vector<8x128xf32>
    %17 = arith.mulf %15, %16 : vector<8x128xf32>
    %c0_16 = arith.constant 0 : index
    %c0_17 = arith.constant 0 : index
    %18 = vector.load %arg8[%c0_16, %c0_17] : memref<128x128xf32, #tpu.memory_space<vmem>>, vector<128x128xf32>
    %c0_18 = arith.constant 0 : index
    %c0_19 = arith.constant 0 : index
    %19 = vector.load %arg9[%c0_18, %c0_19] : memref<128x128xf32, #tpu.memory_space<vmem>>, vector<128x128xf32>
    %c0_20 = arith.constant 0 : index
    %c0_21 = arith.constant 0 : index
    %20 = vector.load %arg10[%c0_20, %c0_21] : memref<128x128xf32, #tpu.memory_space<vmem>>, vector<128x128xf32>
    %21 = arith.mulf %19, %20 : vector<128x128xf32>
    %22 = arith.addf %18, %21 : vector<128x128xf32>
    %c0_22 = arith.constant 0 : index
    %c0_23 = arith.constant 0 : index
    %23 = vector.load %arg11[%c0_22, %c0_23] : memref<1x128xf32, #tpu.memory_space<vmem>>, vector<1x128xf32>
    %c0_24 = arith.constant 0 : index
    %c0_25 = arith.constant 0 : index
    %24 = vector.load %arg12[%c0_24, %c0_25] : memref<1x128xf32, #tpu.memory_space<vmem>>, vector<1x128xf32>
    %c0_26 = arith.constant 0 : index
    %c0_27 = arith.constant 0 : index
    %25 = vector.load %arg13[%c0_26, %c0_27] : memref<1x128xf32, #tpu.memory_space<vmem>>, vector<1x128xf32>
    %26 = arith.mulf %24, %25 : vector<1x128xf32>
    %27 = arith.addf %23, %26 : vector<1x128xf32>
    %cst_28 = arith.constant dense<0.000000e+00> : vector<8x128xf32>
    %28 = tpu.matmul %17, %22, %cst_28 {dimension_numbers = #tpu.dot_dimension_numbers<[1], [0], [0], [1], [0, 0, 1, 1], [], []>} : vector<8x128xf32>, vector<128x128xf32>, vector<8x128xf32> -> vector<8x128xf32>
    %29 = vector.broadcast %27 : vector<1x128xf32> to vector<8x128xf32>
    %30 = arith.addf %28, %29 : vector<8x128xf32>
    %c0_29 = arith.constant 0 : index
    %c0_30 = arith.constant 0 : index
    %31 = vector.load %arg14[%c0_29, %c0_30] : memref<8x128xf32, #tpu.memory_space<vmem>>, vector<8x128xf32>
    tpu.vector_store %arg14[%c0_29, %c0_30], %30 {strides = array<i32>} : memref<8x128xf32, #tpu.memory_space<vmem>>, vector<8x128xf32>,
    return
  }
}

</mosaic_0001>

<llo_original>
// kernel: tpu_custom_call.1
$region0: #{tpu_custom_call.1}
  #allocation0 [shape = 'u32[]', space=smem, size = 0x4, offset = 0x4, fixed_abs, tag = 'smem constant byte address 0x4 - core index']
  #allocation1 [shape = 'u32[72,128]{1,0:T(1,128)}', space=vmem, size = 0x9000, scoped, tag = 'internal scratch']
  %s0 = inlined_call_operand.hbm [shape: f32[8,128], index: 0, kind: input, shape index: {}]
  %s1 = inlined_call_operand.hbm [shape: f32[128,128], index: 1, kind: input, shape index: {}]
  %s2 = inlined_call_operand.hbm [shape: f32[128,128], index: 2, kind: input, shape index: {}]
  %s3 = inlined_call_operand.hbm [shape: f32[128,128], index: 3, kind: input, shape index: {}]
  %s4 = inlined_call_operand.vmem [shape: f32[1,128], index: 4, kind: input, shape index: {}]
  %s5 = inlined_call_operand.vmem [shape: f32[1,128], index: 5, kind: input, shape index: {}]
  %s6 = inlined_call_operand.vmem [shape: f32[1,128], index: 6, kind: input, shape index: {}]
  %s7 = inlined_call_operand.hbm [shape: f32[8,128], index: 7, kind: input, shape index: {}]
  %s8 = inlined_call_operand.hbm [shape: f32[128,128], index: 8, kind: input, shape index: {}]
  %s9 = inlined_call_operand.hbm [shape: f32[128,128], index: 9, kind: input, shape index: {}]
  %s10 = inlined_call_operand.hbm [shape: f32[128,128], index: 10, kind: input, shape index: {}]
  %s11 = inlined_call_operand.vmem [shape: f32[1,128], index: 11, kind: input, shape index: {}]
  %s12 = inlined_call_operand.vmem [shape: f32[1,128], index: 12, kind: input, shape index: {}]
  %s13 = inlined_call_operand.vmem [shape: f32[1,128], index: 13, kind: input, shape index: {}]
  %s14 = inlined_call_operand.hbm [shape: f32[8,128], index: 14, kind: output, shape index: {}]
  %s15 = sld [smem:[#allocation0]]
  $region98: #{tpu_custom_call.1} parent=0
    _
  %s17 = ssub.s32 1, %s15
  %s18 = scalar_select 0, %s17, %s15
  $region1: #{tpu_custom_call.1} parent=0
    #allocation2 [shape = 'u8[4096]{0}', space=vmem, size = 0x1000, scoped, tag = 'input window, operand 0, single buffered']
    #allocation3 [shape = 's32[1]{0}', space=sflag, size = 0x4, scoped, tag = 'scoped memory for tpu_custom_call.1']
    #allocation4 [shape = 's32[1]{0}', space=sflag, size = 0x4, scoped, tag = 'scoped memory for tpu_custom_call.1']
    #allocation5 [shape = 'u8[65536]{0}', space=vmem, size = 0x10000, scoped, tag = 'input window, operand 1, single buffered']
    #allocation6 [shape = 's32[1]{0}', space=sflag, size = 0x4, scoped, tag = 'scoped memory for tpu_custom_call.1']
    #allocation7 [shape = 'u8[65536]{0}', space=vmem, size = 0x10000, scoped, tag = 'input window, operand 2, single buffered']
    #allocation8 [shape = 'u8[65536]{0}', space=vmem, size = 0x10000, scoped, tag = 'input window, operand 3, single buffered']
    #allocation9 [shape = 's32[1]{0}', space=sflag, size = 0x4, scoped, tag = 'scoped memory for tpu_custom_call.1']
    #allocation10 [shape = 'u8[4096]{0}', space=vmem, size = 0x1000, scoped, tag = 'input window, operand 7, single buffered']
    #allocation11 [shape = 'u8[65536]{0}', space=vmem, size = 0x10000, scoped, tag = 'input window, operand 8, single buffered']
    #allocation12 [shape = 's32[1]{0}', space=sflag, size = 0x4, scoped, tag = 'scoped memory for tpu_custom_call.1']
    #allocation13 [shape = 'u8[65536]{0}', space=vmem, size = 0x10000, scoped, tag = 'input window, operand 9, single buffered']
    #allocation14 [shape = 'u8[65536]{0}', space=vmem, size = 0x10000, scoped, tag = 'input window, operand 10, single buffered']
    #allocation15 [shape = 's32[1]{0}', space=sflag, size = 0x4, scoped, tag = 'scoped memory for tpu_custom_call.1']
    #allocation16 [shape = 'u8[4096]{0}', space=vmem, size = 0x1000, scoped, tag = 'output window, operand 0, single buffered']
    %19 = vsyncpa [#allocation3], 0
    %20 = vsyncpa [#allocation6], 0
    %21 = vsyncpa [#allocation9], 0
    %22 = vsyncpa [#allocation12], 0
    %23 = vsyncpa [#allocation15], 0
    %24 = vsyncpa [#allocation4], 0
    // Predicated region
    $region2: #{tpu_custom_call.1} parent=1 // pred_check
      _
    $region3: #{tpu_custom_call.1} parent=1 // pred_check_branch
      %26 = sbr.rel (0) target = $region5
    $region4: #{tpu_custom_call.1} parent=1 // pred_region
      %28 = vsyncadd [#allocation3], 0
      %s30 = sshll.u32 %s0, 4
      %s31 = int_to_ptr.hbm [resolvable:$true] %s30
      %s32 = sshll.u32 [#allocation2], 4
      %s33 = int_to_ptr.vmem [resolvable:$true] %s32
      %35 = dma.hbm_to_vmem [thread:$0]  %s31, 128, %s33, [#allocation3]
    $region5: #{tpu_custom_call.1} parent=1 // pred_fallthru
      _
    // Predicated region
    $region6: #{tpu_custom_call.1} parent=1 // pred_check
      _
    $region7: #{tpu_custom_call.1} parent=1 // pred_check_branch
      %37 = sbr.rel (0) target = $region9
    $region8: #{tpu_custom_call.1} parent=1 // pred_region
      %39 = vsyncadd [#allocation6], 0
      %s40 = sshll.u32 %s1, 4
      %s41 = int_to_ptr.hbm [resolvable:$true] %s40
      %s42 = sshll.u32 [#allocation5], 4
      %s43 = int_to_ptr.vmem [resolvable:$true] %s42
      %48 = dma.hbm_to_vmem [thread:$0]  %s41, 2048, %s43, [#allocation6], 128, 128, 8
    $region9: #{tpu_custom_call.1} parent=1 // pred_fallthru
      _
    // Predicated region
    $region10: #{tpu_custom_call.1} parent=1 // pred_check
      _
    $region11: #{tpu_custom_call.1} parent=1 // pred_check_branch
      %50 = sbr.rel (0) target = $region13
    $region12: #{tpu_custom_call.1} parent=1 // pred_region
      %52 = vsyncadd [#allocation6], 0
      %s53 = sshll.u32 %s2, 4
      %s54 = int_to_ptr.hbm [resolvable:$true] %s53
      %s55 = sshll.u32 [#allocation7], 4
      %s56 = int_to_ptr.vmem [resolvable:$true] %s55
      %61 = dma.hbm_to_vmem [thread:$0]  %s54, 2048, %s56, [#allocation6], 128, 128, 8
    $region13: #{tpu_custom_call.1} parent=1 // pred_fallthru
      _
    // Predicated region
    $region14: #{tpu_custom_call.1} parent=1 // pred_check
      _
    $region15: #{tpu_custom_call.1} parent=1 // pred_check_branch
      %63 = sbr.rel (0) target = $region17
    $region16: #{tpu_custom_call.1} parent=1 // pred_region
      %65 = vsyncadd [#allocation9], 0
      %s66 = sshll.u32 %s3, 4
      %s67 = int_to_ptr.hbm [resolvable:$true] %s66
      %s68 = sshll.u32 [#allocation8], 4
      %s69 = int_to_ptr.vmem [resolvable:$true] %s68
      %74 = dma.hbm_to_vmem [thread:$0]  %s67, 2048, %s69, [#allocation9], 128, 128, 8
    $region17: #{tpu_custom_call.1} parent=1 // pred_fallthru
      _
    // Predicated region
    $region18: #{tpu_custom_call.1} parent=1 // pred_check
      _
    $region19: #{tpu_custom_call.1} parent=1 // pred_check_branch
      %76 = sbr.rel (0) target = $region21
    $region20: #{tpu_custom_call.1} parent=1 // pred_region
      _
    $region21: #{tpu_custom_call.1} parent=1 // pred_fallthru
      _
    // Predicated region
    $region22: #{tpu_custom_call.1} parent=1 // pred_check
      _
    $region23: #{tpu_custom_call.1} parent=1 // pred_check_branch
      %78 = sbr.rel (0) target = $region25
    $region24: #{tpu_custom_call.1} parent=1 // pred_region
      _
    $region25: #{tpu_custom_call.1} parent=1 // pred_fallthru
      _
    // Predicated region
    $region26: #{tpu_custom_call.1} parent=1 // pred_check
      _
    $region27: #{tpu_custom_call.1} parent=1 // pred_check_branch
      %80 = sbr.rel (0) target = $region29
    $region28: #{tpu_custom_call.1} parent=1 // pred_region
      _
    $region29: #{tpu_custom_call.1} parent=1 // pred_fallthru
      _
    // Predicated region
    $region30: #{tpu_custom_call.1} parent=1 // pred_check
      _
    $region31: #{tpu_custom_call.1} parent=1 // pred_check_branch
      %82 = sbr.rel (0) target = $region33
    $region32: #{tpu_custom_call.1} parent=1 // pred_region
      %84 = vsyncadd [#allocation9], 0
      %s86 = sshll.u32 %s7, 4
      %s87 = int_to_ptr.hbm [resolvable:$true] %s86
      %s88 = sshll.u32 [#allocation10], 4
      %s89 = int_to_ptr.vmem [resolvable:$true] %s88
      %91 = dma.hbm_to_vmem [thread:$0]  %s87, 128, %s89, [#allocation9]
    $region33: #{tpu_custom_call.1} parent=1 // pred_fallthru
      _
    // Predicated region
    $region34: #{tpu_custom_call.1} parent=1 // pred_check
      _
    $region35: #{tpu_custom_call.1} parent=1 // pred_check_branch
      %93 = sbr.rel (0) target = $region37
    $region36: #{tpu_custom_call.1} parent=1 // pred_region
      %95 = vsyncadd [#allocation12], 0
      %s96 = sshll.u32 %s8, 4
      %s97 = int_to_ptr.hbm [resolvable:$true] %s96
      %s98 = sshll.u32 [#allocation11], 4
      %s99 = int_to_ptr.vmem [resolvable:$true] %s98
      %104 = dma.hbm_to_vmem [thread:$0]  %s97, 2048, %s99, [#allocation12], 128, 128, 8
    $region37: #{tpu_custom_call.1} parent=1 // pred_fallthru
      _
    // Predicated region
    $region38: #{tpu_custom_call.1} parent=1 // pred_check
      _
    $region39: #{tpu_custom_call.1} parent=1 // pred_check_branch
      %106 = sbr.rel (0) target = $region41
    $region40: #{tpu_custom_call.1} parent=1 // pred_region
      %108 = vsyncadd [#allocation12], 0
      %s109 = sshll.u32 %s9, 4
      %s110 = int_to_ptr.hbm [resolvable:$true] %s109
      %s111 = sshll.u32 [#allocation13], 4
      %s112 = int_to_ptr.vmem [resolvable:$true] %s111
      %117 = dma.hbm_to_vmem [thread:$0]  %s110, 2048, %s112, [#allocation12], 128, 128, 8
    $region41: #{tpu_custom_call.1} parent=1 // pred_fallthru
      _
    // Predicated region
    $region42: #{tpu_custom_call.1} parent=1 // pred_check
      _
    $region43: #{tpu_custom_call.1} parent=1 // pred_check_branch
      %119 = sbr.rel (0) target = $region45
    $region44: #{tpu_custom_call.1} parent=1 // pred_region
      %121 = vsyncadd [#allocation15], 0
      %s122 = sshll.u32 %s10, 4
      %s123 = int_to_ptr.hbm [resolvable:$true] %s122
      %s124 = sshll.u32 [#allocation14], 4
      %s125 = int_to_ptr.vmem [resolvable:$true] %s124
      %130 = dma.hbm_to_vmem [thread:$0]  %s123, 2048, %s125, [#allocation15], 128, 128, 8
    $region45: #{tpu_custom_call.1} parent=1 // pred_fallthru
      _
    // Predicated region
    $region46: #{tpu_custom_call.1} parent=1 // pred_check
      _
    $region47: #{tpu_custom_call.1} parent=1 // pred_check_branch
      %132 = sbr.rel (0) target = $region49
    $region48: #{tpu_custom_call.1} parent=1 // pred_region
      _
    $region49: #{tpu_custom_call.1} parent=1 // pred_fallthru
      _
    // Predicated region
    $region50: #{tpu_custom_call.1} parent=1 // pred_check
      _
    $region51: #{tpu_custom_call.1} parent=1 // pred_check_branch
      %134 = sbr.rel (0) target = $region53
    $region52: #{tpu_custom_call.1} parent=1 // pred_region
      _
    $region53: #{tpu_custom_call.1} parent=1 // pred_fallthru
      _
    // Predicated region
    $region54: #{tpu_custom_call.1} parent=1 // pred_check
      _
    $region55: #{tpu_custom_call.1} parent=1 // pred_check_branch
      %136 = sbr.rel (0) target = $region57
    $region56: #{tpu_custom_call.1} parent=1 // pred_region
      _
    $region57: #{tpu_custom_call.1} parent=1 // pred_fallthru
      _
    // Predicated region
    $region58: #{tpu_custom_call.1} parent=1 // pred_check
      _
    $region59: #{tpu_custom_call.1} parent=1 // pred_check_branch
      %138 = sbr.rel (0) target = $region61
    $region60: #{tpu_custom_call.1} parent=1 // pred_region
      %140 = dma.done [#allocation3], 128
    $region61: #{tpu_custom_call.1} parent=1 // pred_fallthru
      _
    // Predicated region
    $region62: #{tpu_custom_call.1} parent=1 // pred_check
      _
    $region63: #{tpu_custom_call.1} parent=1 // pred_check_branch
      %142 = sbr.rel (0) target = $region65
    $region64: #{tpu_custom_call.1} parent=1 // pred_region
      %144 = dma.done [#allocation6], 2048
    $region65: #{tpu_custom_call.1} parent=1 // pred_fallthru
      _
    // Predicated region
    $region66: #{tpu_custom_call.1} parent=1 // pred_check
      _
    $region67: #{tpu_custom_call.1} parent=1 // pred_check_branch
      %146 = sbr.rel (0) target = $region69
    $region68: #{tpu_custom_call.1} parent=1 // pred_region
      %148 = dma.done [#allocation6], 2048
    $region69: #{tpu_custom_call.1} parent=1 // pred_fallthru
      _
    // Predicated region
    $region70: #{tpu_custom_call.1} parent=1 // pred_check
      _
    $region71: #{tpu_custom_call.1} parent=1 // pred_check_branch
      %150 = sbr.rel (0) target = $region73
    $region72: #{tpu_custom_call.1} parent=1 // pred_region
      %152 = dma.done [#allocation9], 2048
    $region73: #{tpu_custom_call.1} parent=1 // pred_fallthru
      _
    // Predicated region
    $region74: #{tpu_custom_call.1} parent=1 // pred_check
      _
    $region75: #{tpu_custom_call.1} parent=1 // pred_check_branch
      %154 = sbr.rel (0) target = $region77
    $region76: #{tpu_custom_call.1} parent=1 // pred_region
      %156 = dma.done [#allocation9], 128
    $region77: #{tpu_custom_call.1} parent=1 // pred_fallthru
      _
    // Predicated region
    $region78: #{tpu_custom_call.1} parent=1 // pred_check
      _
    $region79: #{tpu_custom_call.1} parent=1 // pred_check_branch
      %158 = sbr.rel (0) target = $region81
    $region80: #{tpu_custom_call.1} parent=1 // pred_region
      %160 = dma.done [#allocation12], 2048
    $region81: #{tpu_custom_call.1} parent=1 // pred_fallthru
      _
    // Predicated region
    $region82: #{tpu_custom_call.1} parent=1 // pred_check
      _
    $region83: #{tpu_custom_call.1} parent=1 // pred_check_branch
      %162 = sbr.rel (0) target = $region85
    $region84: #{tpu_custom_call.1} parent=1 // pred_region
      %164 = dma.done [#allocation12], 2048
    $region85: #{tpu_custom_call.1} parent=1 // pred_fallthru
      _
    // Predicated region
    $region86: #{tpu_custom_call.1} parent=1 // pred_check
      _
    $region87: #{tpu_custom_call.1} parent=1 // pred_check_branch
      %166 = sbr.rel (0) target = $region89
    $region88: #{tpu_custom_call.1} parent=1 // pred_region
      %168 = dma.done [#allocation15], 2048
    $region89: #{tpu_custom_call.1} parent=1 // pred_fallthru
      _
    %v169 = vld [vmem:[#allocation2] sm:$0xff]
    %v170 = vld [vmem:[#allocation5] sm:$0xff]
    %v171 = vld [vmem:[#allocation5 + $0x8] sm:$0xff]
    %v172 = vld [vmem:[#allocation5 + $0x10] sm:$0xff]
    %v173 = vld [vmem:[#allocation5 + $0x18] sm:$0xff]
    %v174 = vld [vmem:[#allocation5 + $0x20] sm:$0xff]
    %v175 = vld [vmem:[#allocation5 + $0x28] sm:$0xff]
    %v176 = vld [vmem:[#allocation5 + $0x30] sm:$0xff]
    %v177 = vld [vmem:[#allocation5 + $0x38] sm:$0xff]
    %v178 = vld [vmem:[#allocation5 + $0x40] sm:$0xff]
    %v179 = vld [vmem:[#allocation5 + $0x48] sm:$0xff]
    %v180 = vld [vmem:[#allocation5 + $0x50] sm:$0xff]
    %v181 = vld [vmem:[#allocation5 + $0x58] sm:$0xff]
    %v182 = vld [vmem:[#allocation5 + $0x60] sm:$0xff]
    %v183 = vld [vmem:[#allocation5 + $0x68] sm:$0xff]
    %v184 = vld [vmem:[#allocation5 + $0x70] sm:$0xff]
    %v185 = vld [vmem:[#allocation5 + $0x78] sm:$0xff]
    %v186 = vld [vmem:[#allocation7] sm:$0xff]
    %v187 = vld [vmem:[#allocation7 + $0x8] sm:$0xff]
    %v188 = vld [vmem:[#allocation7 + $0x10] sm:$0xff]
    %v189 = vld [vmem:[#allocation7 + $0x18] sm:$0xff]
    %v190 = vld [vmem:[#allocation7 + $0x20] sm:$0xff]
    %v191 = vld [vmem:[#allocation7 + $0x28] sm:$0xff]
    %v192 = vld [vmem:[#allocation7 + $0x30] sm:$0xff]
    %v193 = vld [vmem:[#allocation7 + $0x38] sm:$0xff]
    %v194 = vld [vmem:[#allocation7 + $0x40] sm:$0xff]
    %v195 = vld [vmem:[#allocation7 + $0x48] sm:$0xff]
    %v196 = vld [vmem:[#allocation7 + $0x50] sm:$0xff]
    %v197 = vld [vmem:[#allocation7 + $0x58] sm:$0xff]
    %v198 = vld [vmem:[#allocation7 + $0x60] sm:$0xff]
    %v199 = vld [vmem:[#allocation7 + $0x68] sm:$0xff]
    %v200 = vld [vmem:[#allocation7 + $0x70] sm:$0xff]
    %v201 = vld [vmem:[#allocation7 + $0x78] sm:$0xff]
    %v202 = vld [vmem:[#allocation8] sm:$0xff]
    %v203 = vld [vmem:[#allocation8 + $0x8] sm:$0xff]
    %v204 = vld [vmem:[#allocation8 + $0x10] sm:$0xff]
    %v205 = vld [vmem:[#allocation8 + $0x18] sm:$0xff]
    %v206 = vld [vmem:[#allocation8 + $0x20] sm:$0xff]
    %v207 = vld [vmem:[#allocation8 + $0x28] sm:$0xff]
    %v208 = vld [vmem:[#allocation8 + $0x30] sm:$0xff]
    %v209 = vld [vmem:[#allocation8 + $0x38] sm:$0xff]
    %v210 = vld [vmem:[#allocation8 + $0x40] sm:$0xff]
    %v211 = vld [vmem:[#allocation8 + $0x48] sm:$0xff]
    %v212 = vld [vmem:[#allocation8 + $0x50] sm:$0xff]
    %v213 = vld [vmem:[#allocation8 + $0x58] sm:$0xff]
    %v214 = vld [vmem:[#allocation8 + $0x60] sm:$0xff]
    %v215 = vld [vmem:[#allocation8 + $0x68] sm:$0xff]
    %v216 = vld [vmem:[#allocation8 + $0x70] sm:$0xff]
    %v217 = vld [vmem:[#allocation8 + $0x78] sm:$0xff]
    %v218 = vmul.f32 %v186, %v202
    %v219 = vmul.f32 %v187, %v203
    %v220 = vmul.f32 %v188, %v204
    %v221 = vmul.f32 %v189, %v205
    %v222 = vmul.f32 %v190, %v206
    %v223 = vmul.f32 %v191, %v207
    %v224 = vmul.f32 %v192, %v208
    %v225 = vmul.f32 %v193, %v209
    %v226 = vmul.f32 %v194, %v210
    %v227 = vmul.f32 %v195, %v211
    %v228 = vmul.f32 %v196, %v212
    %v229 = vmul.f32 %v197, %v213
    %v230 = vmul.f32 %v198, %v214
    %v231 = vmul.f32 %v199, %v215
    %v232 = vmul.f32 %v200, %v216
    %v233 = vmul.f32 %v201, %v217
    %v234 = vadd.f32 %v170, %v218
    %v235 = vadd.f32 %v171, %v219
    %v236 = vadd.f32 %v172, %v220
    %v237 = vadd.f32 %v173, %v221
    %v238 = vadd.f32 %v174, %v222
    %v239 = vadd.f32 %v175, %v223
    %v240 = vadd.f32 %v176, %v224
    %v241 = vadd.f32 %v177, %v225
    %v242 = vadd.f32 %v178, %v226
    %v243 = vadd.f32 %v179, %v227
    %v244 = vadd.f32 %v180, %v228
    %v245 = vadd.f32 %v181, %v229
    %v246 = vadd.f32 %v182, %v230
    %v247 = vadd.f32 %v183, %v231
    %v248 = vadd.f32 %v184, %v232
    %v249 = vadd.f32 %v185, %v233
    %v250 = vld [vmem:[%s4] sm:$0x1]
    %v251 = vld [vmem:[%s5] sm:$0x1]
    %v252 = vld [vmem:[%s6] sm:$0x1]
    %v253 = vmul.f32 %v251, %v252
    %v254 = vadd.f32 %v250, %v253
    %v256 = vperm.slane %v254, 0
    %258 = vmatpush.msra.mxu0 %v249
    %259 = vmatpush.msra.mxu0 %v248
    %260 = vmatpush.msra.mxu0 %v247
    %261 = vmatpush.msra.mxu0 %v246
    %262 = vmatpush.msra.mxu0 %v245
    %263 = vmatpush.msra.mxu0 %v244
    %264 = vmatpush.msra.mxu0 %v243
    %265 = vmatpush.msra.mxu0 %v242
    %266 = vmatpush.msra.mxu0 %v241
    %267 = vmatpush.msra.mxu0 %v240
    %268 = vmatpush.msra.mxu0 %v239
    %269 = vmatpush.msra.mxu0 %v238
    %270 = vmatpush.msra.mxu0 %v237
    %271 = vmatpush.msra.mxu0 %v236
    %272 = vmatpush.msra.mxu0 %v235
    %273 = vmatpush.msra.mxu0 %v234
    %274 = vmatmul.f32.gmra.mxu0 %v169
    %v275 = vpop.f32.mrf.mxu0
    %v276 = vadd.f32 %v256, %v275
    %277 = vdwg.mxu0
    %v278 = vmax.f32 %v276, 0.0
    %v279 = vld [vmem:[#allocation10] sm:$0xff]
    %v280 = vmul.f32 %v278, %v279
    %v281 = vld [vmem:[#allocation11] sm:$0xff]
    %v282 = vld [vmem:[#allocation11 + $0x8] sm:$0xff]
    %v283 = vld [vmem:[#allocation11 + $0x10] sm:$0xff]
    %v284 = vld [vmem:[#allocation11 + $0x18] sm:$0xff]
    %v285 = vld [vmem:[#allocation11 + $0x20] sm:$0xff]
    %v286 = vld [vmem:[#allocation11 + $0x28] sm:$0xff]
    %v287 = vld [vmem:[#allocation11 + $0x30] sm:$0xff]
    %v288 = vld [vmem:[#allocation11 + $0x38] sm:$0xff]
    %v289 = vld [vmem:[#allocation11 + $0x40] sm:$0xff]
    %v290 = vld [vmem:[#allocation11 + $0x48] sm:$0xff]
    %v291 = vld [vmem:[#allocation11 + $0x50] sm:$0xff]
    %v292 = vld [vmem:[#allocation11 + $0x58] sm:$0xff]
    %v293 = vld [vmem:[#allocation11 + $0x60] sm:$0xff]
    %v294 = vld [vmem:[#allocation11 + $0x68] sm:$0xff]
    %v295 = vld [vmem:[#allocation11 + $0x70] sm:$0xff]
    %v296 = vld [vmem:[#allocation11 + $0x78] sm:$0xff]
    %v297 = vld [vmem:[#allocation13] sm:$0xff]
    %v298 = vld [vmem:[#allocation13 + $0x8] sm:$0xff]
    %v299 = vld [vmem:[#allocation13 + $0x10] sm:$0xff]
    %v300 = vld [vmem:[#allocation13 + $0x18] sm:$0xff]
    %v301 = vld [vmem:[#allocation13 + $0x20] sm:$0xff]
    %v302 = vld [vmem:[#allocation13 + $0x28] sm:$0xff]
    %v303 = vld [vmem:[#allocation13 + $0x30] sm:$0xff]
    %v304 = vld [vmem:[#allocation13 + $0x38] sm:$0xff]
    %v305 = vld [vmem:[#allocation13 + $0x40] sm:$0xff]
    %v306 = vld [vmem:[#allocation13 + $0x48] sm:$0xff]
    %v307 = vld [vmem:[#allocation13 + $0x50] sm:$0xff]
    %v308 = vld [vmem:[#allocation13 + $0x58] sm:$0xff]
    %v309 = vld [vmem:[#allocation13 + $0x60] sm:$0xff]
    %v310 = vld [vmem:[#allocation13 + $0x68] sm:$0xff]
    %v311 = vld [vmem:[#allocation13 + $0x70] sm:$0xff]
    %v312 = vld [vmem:[#allocation13 + $0x78] sm:$0xff]
    %v313 = vld [vmem:[#allocation14] sm:$0xff]
    %v314 = vld [vmem:[#allocation14 + $0x8] sm:$0xff]
    %v315 = vld [vmem:[#allocation14 + $0x10] sm:$0xff]
    %v316 = vld [vmem:[#allocation14 + $0x18] sm:$0xff]
    %v317 = vld [vmem:[#allocation14 + $0x20] sm:$0xff]
    %v318 = vld [vmem:[#allocation14 + $0x28] sm:$0xff]
    %v319 = vld [vmem:[#allocation14 + $0x30] sm:$0xff]
    %v320 = vld [vmem:[#allocation14 + $0x38] sm:$0xff]
    %v321 = vld [vmem:[#allocation14 + $0x40] sm:$0xff]
    %v322 = vld [vmem:[#allocation14 + $0x48] sm:$0xff]
    %v323 = vld [vmem:[#allocation14 + $0x50] sm:$0xff]
    %v324 = vld [vmem:[#allocation14 + $0x58] sm:$0xff]
    %v325 = vld [vmem:[#allocation14 + $0x60] sm:$0xff]
    %v326 = vld [vmem:[#allocation14 + $0x68] sm:$0xff]
    %v327 = vld [vmem:[#allocation14 + $0x70] sm:$0xff]
    %v328 = vld [vmem:[#allocation14 + $0x78] sm:$0xff]
    %v329 = vmul.f32 %v297, %v313
    %v330 = vmul.f32 %v298, %v314
    %v331 = vmul.f32 %v299, %v315
    %v332 = vmul.f32 %v300, %v316
    %v333 = vmul.f32 %v301, %v317
    %v334 = vmul.f32 %v302, %v318
    %v335 = vmul.f32 %v303, %v319
    %v336 = vmul.f32 %v304, %v320
    %v337 = vmul.f32 %v305, %v321
    %v338 = vmul.f32 %v306, %v322
    %v339 = vmul.f32 %v307, %v323
    %v340 = vmul.f32 %v308, %v324
    %v341 = vmul.f32 %v309, %v325
    %v342 = vmul.f32 %v310, %v326
    %v343 = vmul.f32 %v311, %v327
    %v344 = vmul.f32 %v312, %v328
    %v345 = vadd.f32 %v281, %v329
    %v346 = vadd.f32 %v282, %v330
    %v347 = vadd.f32 %v283, %v331
    %v348 = vadd.f32 %v284, %v332
    %v349 = vadd.f32 %v285, %v333
    %v350 = vadd.f32 %v286, %v334
    %v351 = vadd.f32 %v287, %v335
    %v352 = vadd.f32 %v288, %v336
    %v353 = vadd.f32 %v289, %v337
    %v354 = vadd.f32 %v290, %v338
    %v355 = vadd.f32 %v291, %v339
    %v356 = vadd.f32 %v292, %v340
    %v357 = vadd.f32 %v293, %v341
    %v358 = vadd.f32 %v294, %v342
    %v359 = vadd.f32 %v295, %v343
    %v360 = vadd.f32 %v296, %v344
    %v361 = vld [vmem:[%s11] sm:$0x1]
    %v362 = vld [vmem:[%s12] sm:$0x1]
    %v363 = vld [vmem:[%s13] sm:$0x1]
    %v364 = vmul.f32 %v362, %v363
    %v365 = vadd.f32 %v361, %v364
    %v367 = vperm.slane %v365, 0
    %369 = vmatpush.msra.mxu0 %v360
    %370 = vmatpush.msra.mxu0 %v359
    %371 = vmatpush.msra.mxu0 %v358
    %372 = vmatpush.msra.mxu0 %v357
    %373 = vmatpush.msra.mxu0 %v356
    %374 = vmatpush.msra.mxu0 %v355
    %375 = vmatpush.msra.mxu0 %v354
    %376 = vmatpush.msra.mxu0 %v353
    %377 = vmatpush.msra.mxu0 %v352
    %378 = vmatpush.msra.mxu0 %v351
    %379 = vmatpush.msra.mxu0 %v350
    %380 = vmatpush.msra.mxu0 %v349
    %381 = vmatpush.msra.mxu0 %v348
    %382 = vmatpush.msra.mxu0 %v347
    %383 = vmatpush.msra.mxu0 %v346
    %384 = vmatpush.msra.mxu0 %v345
    %385 = vmatmul.f32.gmra.mxu0 %v280
    %v386 = vpop.f32.mrf.mxu0
    %v387 = vadd.f32 %v367, %v386
    %388 = vdwg.mxu0
    %389 = vst [vmem:[#allocation16] sm:$0xff] %v387
    // Predicated region
    $region90: #{tpu_custom_call.1} parent=1 // pred_check
      _
    $region91: #{tpu_custom_call.1} parent=1 // pred_check_branch
      %391 = sbr.rel (0) target = $region93
    $region92: #{tpu_custom_call.1} parent=1 // pred_region
      %393 = vsyncadd [#allocation4], 0
      %s395 = sshll.u32 [#allocation16], 4
      %s396 = int_to_ptr.vmem [resolvable:$true] %s395
      %s397 = sshll.u32 %s14, 4
      %s398 = int_to_ptr.hbm [resolvable:$true] %s397
      %400 = dma.vmem_to_hbm [thread:$0]  %s396, 128, %s398, [#allocation4]
    $region93: #{tpu_custom_call.1} parent=1 // pred_fallthru
      _
    // Predicated region
    $region94: #{tpu_custom_call.1} parent=1 // pred_check
      _
    $region95: #{tpu_custom_call.1} parent=1 // pred_check_branch
      %402 = sbr.rel (0) target = $region97
    $region96: #{tpu_custom_call.1} parent=1 // pred_region
      %404 = dma.done [#allocation4], 128
    $region97: #{tpu_custom_call.1} parent=1 // pred_fallthru
      _
    %405 = vsyncpa [#allocation3], 1
    %406 = vsyncpa [#allocation6], 1
    %407 = vsyncpa [#allocation9], 1
    %408 = vsyncpa [#allocation12], 1
    %409 = vsyncpa [#allocation15], 1
    %410 = vsyncpa [#allocation4], 1

</llo_original>
